<compile_context>
chip_gen: v5e
topology: v5e:2x2
jax: 0.10.0
libtpu: 0.0.40
codegen_flags: <defaults>
</compile_context>

<pallas_src>
import math

import jax
import jax.numpy as jnp
import numpy as np
from jax.experimental import pallas as pl
from jax.experimental.pallas import tpu as pltpu

NUM_CLASSES = 10
EMB_SIZE = 2
EPS = 1e-12          # F.normalize default eps
EPS_SQ = EPS * EPS   # max(sqrt(s), eps) == sqrt(max(s, eps*eps)) for s >= 0


def arcface_kernel(xt_ref, cls_ref, out_ref):
    """ArcFace forward on one batch tile.

    xt_ref : (TB, E+1) f32  columns [x_0 .. x_{E-1}, targ (integer-valued)]
    cls_ref: (4E+1, C) f32  rows [W_norm (E) | W1a.T (E) | W1_norm (E) |
                                  W1b.T (E) | ||W1b_c|| (1)]   (batch-invariant)
    out_ref: (TB, 3C+1) f32 lanes [logits1 | logits2 | dist | dis_norm]
    """
    TB = xt_ref.shape[0]
    E = xt_ref.shape[1] - 1
    C = cls_ref.shape[1]

    xs = [xt_ref[:, e:e + 1] for e in range(E)]                  # E x (TB, 1)
    targ = xt_ref[:, E:E + 1].astype(jnp.int32)                  # (TB, 1)

    w_norm = [cls_ref[e:e + 1, :] for e in range(E)]                     # F.normalize(W, 0)
    w1a = [cls_ref[E + e:E + e + 1, :] for e in range(E)]                # (s1-9)*W_norm
    w1_norm = [cls_ref[2 * E + e:2 * E + e + 1, :] for e in range(E)]    # -normalize(W1.T, 0)
    w1b = [cls_ref[3 * E + e:3 * E + e + 1, :] for e in range(E)]        # (s1+5)*W_norm
    w1b_nrm = cls_ref[4 * E:4 * E + 1, :]                                # ||W1b_c||

    # one-hot(targ), reused by every [targ] gather (masked lane reduce over C)
    ids = jax.lax.broadcasted_iota(jnp.int32, (TB, C), 1)
    onehot = (targ == ids).astype(jnp.float32)                   # (TB, C)

    sumsq_x = xs[0] * xs[0]
    for e in range(1, E):
        sumsq_x = sumsq_x + xs[e] * xs[e]                        # (TB, 1)
    inv_xn = jax.lax.rsqrt(jnp.maximum(sumsq_x, EPS_SQ))         # 1/max(||x||, eps)

    # ---- logits1 = x_norm @ W_norm  (E broadcast FMAs on the VPU, no MXU) --
    raw = xs[0] * w_norm[0]
    for e in range(1, E):
        raw = raw + xs[e] * w_norm[e]                            # (TB, C)
    logits1 = raw * inv_xn

    # ---- logits2 = R_norm @ W1_norm,  R = x - W1a[targ] --------------------
    g = [jnp.sum(onehot * w1a[e], axis=1, keepdims=True) for e in range(E)]
    r = [xs[e] - g[e] for e in range(E)]
    sumsq_r = r[0] * r[0]
    for e in range(1, E):
        sumsq_r = sumsq_r + r[e] * r[e]
    inv_rn = jax.lax.rsqrt(jnp.maximum(sumsq_r, EPS_SQ))
    logits2 = (r[0] * inv_rn) * w1_norm[0]
    for e in range(1, E):
        logits2 = logits2 + (r[e] * inv_rn) * w1_norm[e]         # (TB, C)

    # ---- dist[b,c] = ||x_b - W1b_c||^2  (direct, non-negative form) --------
    d = xs[0] - w1b[0]
    dist = d * d
    for e in range(1, E):
        d = xs[e] - w1b[e]
        dist = dist + d * d                                      # (TB, C)

    # ---- dis_norm = (||W1b[targ]|| - ||x||)^2  (torch.norm: no eps) --------
    gnrm = jnp.sum(onehot * w1b_nrm, axis=1, keepdims=True)      # (TB, 1)
    dis_norm = (gnrm - jnp.sqrt(sumsq_x)) ** 2

    # ---- packed lane-dense writeback ---------------------------------------
    out_ref[:, 0:C] = logits1
    out_ref[:, C:2 * C] = logits2
    out_ref[:, 2 * C:3 * C] = dist
    out_ref[:, 3 * C:3 * C + 1] = dis_norm


def arcface_forward(x, targ, W, s1, *, block_b=1024):
    """Returns (x_norm @ W_norm, R_norm @ W1_norm, (dist, dis_norm), x, W)."""
    assert block_b % 8 == 0
    x = jnp.asarray(x, jnp.float32)
    W = jnp.asarray(W, jnp.float32)
    s1 = jnp.asarray(s1, jnp.float32)
    B, E = x.shape
    E2, C = W.shape
    assert E == E2 and s1.size == C
    out_c = 3 * C + 1

    # ---- batch-invariant per-class setup, hoisted out of the kernel --------
    s1r = s1.reshape(1, C)
    w_norm = W * jax.lax.rsqrt(
        jnp.maximum(jnp.sum(W * W, axis=0, keepdims=True), EPS_SQ))       # F.normalize(W, 0)
    w1a_t = (s1r - 9.0) * w_norm                                          # W1.T, W1=(s1-9)*normalize(W.T,1)
    w1_norm = -(w1a_t * jax.lax.rsqrt(
        jnp.maximum(jnp.sum(w1a_t * w1a_t, axis=0, keepdims=True), EPS_SQ)))  # -F.normalize(W1.T, 0)
    w1b_t = (s1r + 5.0) * w_norm                                          # W1b.T
    w1b_nrm = jnp.sqrt(jnp.sum(w1b_t * w1b_t, axis=0, keepdims=True))     # ||W1b_c||
    cls = jnp.concatenate([w_norm, w1a_t, w1_norm, w1b_t, w1b_nrm], axis=0)   # (4E+1, C)

    # fuse x and targ into a single lane-dense input slab (one DMA stream)
    xt = jnp.concatenate([x, targ.astype(jnp.float32).reshape(B, 1)], axis=1)  # (B, E+1)

    if B <= block_b:
        # single tile: no grid -> no per-step scaffolding / pipeline overhead
        packed = pl.pallas_call(
            arcface_kernel,
            out_shape=jax.ShapeDtypeStruct((B, out_c), jnp.float32),
            in_specs=[pl.BlockSpec(memory_space=pltpu.MemorySpace.VMEM),
                      pl.BlockSpec(memory_space=pltpu.MemorySpace.VMEM)],
            out_specs=pl.BlockSpec(memory_space=pltpu.MemorySpace.VMEM),
        )(xt, cls)
    else:
        n_tiles = pl.cdiv(B, block_b)
        b_pad = n_tiles * block_b
        if b_pad != B:
            xt = jnp.pad(xt, ((0, b_pad - B), (0, 0)))
        packed = pl.pallas_call(
            arcface_kernel,
            out_shape=jax.ShapeDtypeStruct((b_pad, out_c), jnp.float32),
            grid=(n_tiles,),
            in_specs=[
                pl.BlockSpec((block_b, E + 1), lambda i: (i, 0)),   # batch tile
                pl.BlockSpec((4 * E + 1, C), lambda i: (0, 0)),     # per-class block stays resident
            ],
            out_specs=pl.BlockSpec((block_b, out_c), lambda i: (i, 0)),
            compiler_params=pltpu.CompilerParams(
                dimension_semantics=("parallel",)),                 # v7x: tiles split over 2 TCs
        )(xt, cls)

    logits1 = packed[:B, 0:C]
    logits2 = packed[:B, C:2 * C]
    dist = packed[:B, 2 * C:3 * C]
    dis_norm = packed[:B, 3 * C]
    return (logits1, logits2, (dist, dis_norm), x, W)


def arcface_reference(x, targ, W, s1):
    """Direct jnp transcription of the PyTorch forward (verification only)."""
    eps = 1e-12
    x = jnp.asarray(x, jnp.float32)
    W = jnp.asarray(W, jnp.float32)
    s1 = jnp.asarray(s1, jnp.float32)
    norm_rows = lambda a: a / jnp.maximum(jnp.linalg.norm(a, axis=1, keepdims=True), eps)
    norm_cols = lambda a: a / jnp.maximum(jnp.linalg.norm(a, axis=0, keepdims=True), eps)
    x_norm = norm_rows(x)
    W_norm = norm_cols(W)
    W1 = (s1 - 9.0).reshape(-1, 1) * norm_rows(W.T)              # (C, E)
    R = -W1[targ] + x
    W1_norm = -norm_cols(W1.T)
    R_norm = norm_rows(R)
    W1b = (s1 + 5.0).reshape(-1, 1) * norm_rows(W.T)             # (C, E)
    dist = jnp.sum((W1b[None, :, :] - x[:, None, :]) ** 2, axis=-1)   # Contrastive_Center
    dis_norm = (jnp.linalg.norm(W1b[targ], axis=1) - jnp.linalg.norm(x, axis=1)) ** 2
    return (x_norm @ W_norm, R_norm @ W1_norm, (dist, dis_norm), x, W)


if __name__ == "__main__":
    key = jax.random.PRNGKey(0)
    k_w, k_x, k_t, k_x2, k_t2 = jax.random.split(key, 5)

    # nn.init.kaiming_uniform_(W) for W of shape (emb_size, num_classes):
    # fan_in = num_classes, gain = sqrt(2), bound = gain * sqrt(3 / fan_in)
    bound = math.sqrt(2.0) * math.sqrt(3.0 / NUM_CLASSES)
    W = jax.random.uniform(k_w, (EMB_SIZE, NUM_CLASSES), jnp.float32, -bound, bound)

    # TODO(synk): `s1` is an undefined module-level global in the PyTorch forward;
    # defined here deterministically as a per-class scale vector (num_classes,).
    s1 = 30.0 + 0.1 * jnp.arange(NUM_CLASSES, dtype=jnp.float32)

    def check(got, want):
        np.testing.assert_allclose(np.asarray(got), np.asarray(want),
                                   rtol=1e-3, atol=1e-3)

    # --- small batch: gridless single-tile path ------------------------------
    B = 8
    x = jax.random.normal(k_x, (B, EMB_SIZE), jnp.float32)
    targ = jax.random.randint(k_t, (B,), 0, NUM_CLASSES, dtype=jnp.int32)
    out = arcface_forward(x, targ, W, s1)
    jax.block_until_ready(out)
    ref = arcface_reference(x, targ, W, s1)
    for a, b in ((out[0], ref[0]), (out[1], ref[1]),
                 (out[2][0], ref[2][0]), (out[2][1], ref[2][1])):
        check(a, b)

    # --- larger batch: tiled grid path (batch axis marked "parallel") --------
    B2 = 2048
    x2 = jax.random.normal(k_x2, (B2, EMB_SIZE), jnp.float32)
    targ2 = jax.random.randint(k_t2, (B2,), 0, NUM_CLASSES, dtype=jnp.int32)
    out2 = arcface_forward(x2, targ2, W, s1, block_b=512)
    jax.block_until_ready(out2)
    ref2 = arcface_reference(x2, targ2, W, s1)
    for a, b in ((out2[0], ref2[0]), (out2[1], ref2[1]),
                 (out2[2][0], ref2[2][0]), (out2[2][1], ref2[2][1])):
        check(a, b)

    print("KERNEL_OK")
</pallas_src>

<mosaic_0001>
module attributes {stable_mosaic.version = 11 : i64} {
  func.func @arcface_kernel(%arg0: memref<8x3xf32, #tpu.memory_space<vmem>>, %arg1: memref<9x10xf32, #tpu.memory_space<vmem>>, %arg2: memref<8x31xf32, #tpu.memory_space<vmem>>) attributes {dimension_semantics = [], scalar_prefetch = 0 : i64, scratch_operands = 0 : i64, tpu.core_type = #tpu.core_type<tc>} {
    %c0 = arith.constant 0 : index
    %c0_0 = arith.constant 0 : index
    %0 = vector.load %arg0[%c0, %c0_0] : memref<8x3xf32, #tpu.memory_space<vmem>>, vector<8x1xf32>
    %c0_1 = arith.constant 0 : index
    %c1 = arith.constant 1 : index
    %1 = vector.load %arg0[%c0_1, %c1] : memref<8x3xf32, #tpu.memory_space<vmem>>, vector<8x1xf32>
    %c0_2 = arith.constant 0 : index
    %c2 = arith.constant 2 : index
    %2 = vector.load %arg0[%c0_2, %c2] : memref<8x3xf32, #tpu.memory_space<vmem>>, vector<8x1xf32>
    %3 = arith.fptosi %2 : vector<8x1xf32> to vector<8x1xi32>
    %c0_3 = arith.constant 0 : index
    %c0_4 = arith.constant 0 : index
    %4 = vector.load %arg1[%c0_3, %c0_4] : memref<9x10xf32, #tpu.memory_space<vmem>>, vector<1x10xf32>
    %c1_5 = arith.constant 1 : index
    %c0_6 = arith.constant 0 : index
    %5 = vector.load %arg1[%c1_5, %c0_6] : memref<9x10xf32, #tpu.memory_space<vmem>>, vector<1x10xf32>
    %c2_7 = arith.constant 2 : index
    %c0_8 = arith.constant 0 : index
    %6 = vector.load %arg1[%c2_7, %c0_8] : memref<9x10xf32, #tpu.memory_space<vmem>>, vector<1x10xf32>
    %c3 = arith.constant 3 : index
    %c0_9 = arith.constant 0 : index
    %7 = vector.load %arg1[%c3, %c0_9] : memref<9x10xf32, #tpu.memory_space<vmem>>, vector<1x10xf32>
    %c4 = arith.constant 4 : index
    %c0_10 = arith.constant 0 : index
    %8 = vector.load %arg1[%c4, %c0_10] : memref<9x10xf32, #tpu.memory_space<vmem>>, vector<1x10xf32>
    %c5 = arith.constant 5 : index
    %c0_11 = arith.constant 0 : index
    %9 = vector.load %arg1[%c5, %c0_11] : memref<9x10xf32, #tpu.memory_space<vmem>>, vector<1x10xf32>
    %c6 = arith.constant 6 : index
    %c0_12 = arith.constant 0 : index
    %10 = vector.load %arg1[%c6, %c0_12] : memref<9x10xf32, #tpu.memory_space<vmem>>, vector<1x10xf32>
    %c7 = arith.constant 7 : index
    %c0_13 = arith.constant 0 : index
    %11 = vector.load %arg1[%c7, %c0_13] : memref<9x10xf32, #tpu.memory_space<vmem>>, vector<1x10xf32>
    %c8 = arith.constant 8 : index
    %c0_14 = arith.constant 0 : index
    %12 = vector.load %arg1[%c8, %c0_14] : memref<9x10xf32, #tpu.memory_space<vmem>>, vector<1x10xf32>
    %13 = tpu.iota {dimensions = array<i32: 1>} : vector<8x10xi32>
    %14 = vector.broadcast %3 : vector<8x1xi32> to vector<8x10xi32>
    %15 = arith.cmpi eq, %14, %13 : vector<8x10xi32>
    %16 = arith.extui %15 : vector<8x10xi1> to vector<8x10xi32>
    %17 = arith.sitofp %16 : vector<8x10xi32> to vector<8x10xf32>
    %18 = arith.mulf %0, %0 : vector<8x1xf32>
    %19 = arith.mulf %1, %1 : vector<8x1xf32>
    %20 = arith.addf %18, %19 : vector<8x1xf32>
    %cst = arith.constant 1.000000e-24 : f32
    %21 = vector.broadcast %cst : f32 to vector<8x1xf32>
    %22 = arith.maximumf %20, %21 : vector<8x1xf32>
    %23 = math.rsqrt %22 : vector<8x1xf32>
    %24 = vector.broadcast %0 : vector<8x1xf32> to vector<8x10xf32>
    %25 = vector.broadcast %4 : vector<1x10xf32> to vector<8x10xf32>
    %26 = arith.mulf %24, %25 : vector<8x10xf32>
    %27 = vector.broadcast %1 : vector<8x1xf32> to vector<8x10xf32>
    %28 = vector.broadcast %5 : vector<1x10xf32> to vector<8x10xf32>
    %29 = arith.mulf %27, %28 : vector<8x10xf32>
    %30 = arith.addf %26, %29 : vector<8x10xf32>
    %31 = vector.broadcast %23 : vector<8x1xf32> to vector<8x10xf32>
    %32 = arith.mulf %30, %31 : vector<8x10xf32>
    %33 = vector.broadcast %6 : vector<1x10xf32> to vector<8x10xf32>
    %34 = arith.mulf %17, %33 : vector<8x10xf32>
    %cst_15 = arith.constant dense<0.000000e+00> : vector<8xf32>
    %35 = vector.multi_reduction <add>, %34, %cst_15 [1] : vector<8x10xf32> to vector<8xf32>
    %36 = vector.shape_cast %35 : vector<8xf32> to vector<8x1xf32>
    %37 = vector.broadcast %7 : vector<1x10xf32> to vector<8x10xf32>
    %38 = arith.mulf %17, %37 : vector<8x10xf32>
    %cst_16 = arith.constant dense<0.000000e+00> : vector<8xf32>
    %39 = vector.multi_reduction <add>, %38, %cst_16 [1] : vector<8x10xf32> to vector<8xf32>
    %40 = vector.shape_cast %39 : vector<8xf32> to vector<8x1xf32>
    %41 = arith.subf %0, %36 : vector<8x1xf32>
    %42 = arith.subf %1, %40 : vector<8x1xf32>
    %43 = arith.mulf %41, %41 : vector<8x1xf32>
    %44 = arith.mulf %42, %42 : vector<8x1xf32>
    %45 = arith.addf %43, %44 : vector<8x1xf32>
    %cst_17 = arith.constant 1.000000e-24 : f32
    %46 = vector.broadcast %cst_17 : f32 to vector<8x1xf32>
    %47 = arith.maximumf %45, %46 : vector<8x1xf32>
    %48 = math.rsqrt %47 : vector<8x1xf32>
    %49 = arith.mulf %41, %48 : vector<8x1xf32>
    %50 = vector.broadcast %49 : vector<8x1xf32> to vector<8x10xf32>
    %51 = vector.broadcast %8 : vector<1x10xf32> to vector<8x10xf32>
    %52 = arith.mulf %50, %51 : vector<8x10xf32>
    %53 = arith.mulf %42, %48 : vector<8x1xf32>
    %54 = vector.broadcast %53 : vector<8x1xf32> to vector<8x10xf32>
    %55 = vector.broadcast %9 : vector<1x10xf32> to vector<8x10xf32>
    %56 = arith.mulf %54, %55 : vector<8x10xf32>
    %57 = arith.addf %52, %56 : vector<8x10xf32>
    %58 = vector.broadcast %0 : vector<8x1xf32> to vector<8x10xf32>
    %59 = vector.broadcast %10 : vector<1x10xf32> to vector<8x10xf32>
    %60 = arith.subf %58, %59 : vector<8x10xf32>
    %61 = arith.mulf %60, %60 : vector<8x10xf32>
    %62 = vector.broadcast %1 : vector<8x1xf32> to vector<8x10xf32>
    %63 = vector.broadcast %11 : vector<1x10xf32> to vector<8x10xf32>
    %64 = arith.subf %62, %63 : vector<8x10xf32>
    %65 = arith.mulf %64, %64 : vector<8x10xf32>
    %66 = arith.addf %61, %65 : vector<8x10xf32>
    %67 = vector.broadcast %12 : vector<1x10xf32> to vector<8x10xf32>
    %68 = arith.mulf %17, %67 : vector<8x10xf32>
    %cst_18 = arith.constant dense<0.000000e+00> : vector<8xf32>
    %69 = vector.multi_reduction <add>, %68, %cst_18 [1] : vector<8x10xf32> to vector<8xf32>
    %70 = vector.shape_cast %69 : vector<8xf32> to vector<8x1xf32>
    %71 = math.sqrt %20 : vector<8x1xf32>
    %72 = arith.subf %70, %71 : vector<8x1xf32>
    %73 = arith.mulf %72, %72 : vector<8x1xf32>
    %c0_19 = arith.constant 0 : index
    %c0_20 = arith.constant 0 : index
    %74 = vector.load %arg2[%c0_19, %c0_20] : memref<8x31xf32, #tpu.memory_space<vmem>>, vector<8x10xf32>
    tpu.vector_store %arg2[%c0_19, %c0_20], %32 {strides = array<i32>} : memref<8x31xf32, #tpu.memory_space<vmem>>, vector<8x10xf32>,
    %c0_21 = arith.constant 0 : index
    %c10 = arith.constant 10 : index
    %75 = vector.load %arg2[%c0_21, %c10] : memref<8x31xf32, #tpu.memory_space<vmem>>, vector<8x10xf32>
    tpu.vector_store %arg2[%c0_21, %c10], %57 {strides = array<i32>} : memref<8x31xf32, #tpu.memory_space<vmem>>, vector<8x10xf32>,
    %c0_22 = arith.constant 0 : index
    %c20 = arith.constant 20 : index
    %76 = vector.load %arg2[%c0_22, %c20] : memref<8x31xf32, #tpu.memory_space<vmem>>, vector<8x10xf32>
    tpu.vector_store %arg2[%c0_22, %c20], %66 {strides = array<i32>} : memref<8x31xf32, #tpu.memory_space<vmem>>, vector<8x10xf32>,
    %c0_23 = arith.constant 0 : index
    %c30 = arith.constant 30 : index
    %77 = vector.load %arg2[%c0_23, %c30] : memref<8x31xf32, #tpu.memory_space<vmem>>, vector<8x1xf32>
    tpu.vector_store %arg2[%c0_23, %c30], %73 {strides = array<i32>} : memref<8x31xf32, #tpu.memory_space<vmem>>, vector<8x1xf32>,
    return
  }
}

</mosaic_0001>

<llo_original>
// kernel: tpu_custom_call.1
$region0: #{tpu_custom_call.1}
  #allocation0 [shape = 'u32[]', space=smem, size = 0x4, offset = 0x4, fixed_abs, tag = 'smem constant byte address 0x4 - core index']
  #allocation1 [shape = 'u32[72,128]{1,0:T(1,128)}', space=vmem, size = 0x9000, scoped, tag = 'internal scratch']
  %s0 = inlined_call_operand.vmem [shape: f32[8,3], index: 0, kind: input, shape index: {}]
  %s1 = inlined_call_operand.hbm [shape: f32[9,10], index: 1, kind: input, shape index: {}]
  %s2 = inlined_call_operand.hbm [shape: f32[8,31], index: 2, kind: output, shape index: {}]
  %s3 = sld [smem:[#allocation0]]
  $region22: #{tpu_custom_call.1} parent=0
    _
  %s5 = ssub.s32 1, %s3
  %s6 = scalar_select 0, %s5, %s3
  $region1: #{tpu_custom_call.1} parent=0
    #allocation2 [shape = 'u8[8192]{0}', space=vmem, size = 0x2000, scoped, tag = 'input window, operand 1, single buffered']
    #allocation3 [shape = 's32[1]{0}', space=sflag, size = 0x4, scoped, tag = 'scoped memory for tpu_custom_call.1']
    #allocation4 [shape = 's32[1]{0}', space=sflag, size = 0x4, scoped, tag = 'scoped memory for tpu_custom_call.1']
    #allocation5 [shape = 'u8[4096]{0}', space=vmem, size = 0x1000, scoped, tag = 'output window, operand 0, single buffered']
    %7 = vsyncpa [#allocation3], 0
    %8 = vsyncpa [#allocation4], 0
    // Predicated region
    $region2: #{tpu_custom_call.1} parent=1 // pred_check
      _
    $region3: #{tpu_custom_call.1} parent=1 // pred_check_branch
      %10 = sbr.rel (0) target = $region5
    $region4: #{tpu_custom_call.1} parent=1 // pred_region
      _
    $region5: #{tpu_custom_call.1} parent=1 // pred_fallthru
      _
    // Predicated region
    $region6: #{tpu_custom_call.1} parent=1 // pred_check
      _
    $region7: #{tpu_custom_call.1} parent=1 // pred_check_branch
      %12 = sbr.rel (0) target = $region9
    $region8: #{tpu_custom_call.1} parent=1 // pred_region
      %14 = vsyncadd [#allocation3], 0
      %s15 = sshll.u32 %s1, 4
      %s16 = int_to_ptr.hbm [resolvable:$true] %s15
      %s17 = sshll.u32 [#allocation2], 4
      %s18 = int_to_ptr.vmem [resolvable:$true] %s17
      %23 = dma.hbm_to_vmem [thread:$0]  %s16, 256, %s18, [#allocation3], 128, 128, 8
    $region9: #{tpu_custom_call.1} parent=1 // pred_fallthru
      _
    // Predicated region
    $region10: #{tpu_custom_call.1} parent=1 // pred_check
      _
    $region11: #{tpu_custom_call.1} parent=1 // pred_check_branch
      %25 = sbr.rel (0) target = $region13
    $region12: #{tpu_custom_call.1} parent=1 // pred_region
      %27 = dma.done [#allocation3], 256
    $region13: #{tpu_custom_call.1} parent=1 // pred_fallthru
      _
    %v28 = vld [vmem:[%s0] sm:$0xff]
    %v29 = vcvt.f32.s32.to.zero.pseudo %v28
    %v30 = vld [vmem:[#allocation2] sm:$0x1]
    %v31 = vld [vmem:[#allocation2 + $0x1] sm:$0x1]
    %v32 = vld [vmem:[#allocation2 + $0x2] sm:$0x1]
    %v33 = vld [vmem:[#allocation2 + $0x3] sm:$0x1]
    %v34 = vld [vmem:[#allocation2 + $0x4] sm:$0x1]
    %v35 = vld [vmem:[#allocation2 + $0x5] sm:$0x1]
    %v36 = vld [vmem:[#allocation2 + $0x6] sm:$0x1]
    %v37 = vld [vmem:[#allocation2 + $0x7] sm:$0x1]
    %v38 = vld [vmem:[#allocation2 + $0x8] sm:$0x1]
    %v39 = vlaneseq
    %v40 = vand.u32 %v39, 127
    %41 = vset.pattern.permute.xlu0 2
    %42 = vperm.xlu0 %41, %v29
    %v43 = vpop.permute.xlu0 %42
    %vm44 = vcmp.eq.s32.totalorder %v43, %v40
    %v45 = vsel %vm44, 1, 0
    %v46 = vcvt.s32.f32 %v45
    %v47 = vmul.f32 %v28, %v28
    %49 = vrot.lane.b32.xlu0 %v47, 127
    %v50 = vpop.permute.xlu0 %49
    %v52 = vadd.f32 %v47, %v50
    %v53 = vmax.f32 %v52, 1e-24
    %v54 = vrsqrt.pop %v53
    %v55 = vmul.f32 %v54, %v53
    %v56 = vmul.f32 %v55, %v54
    %v57 = vmul.f32 0.5, %v56
    %v58 = vsub.f32 1.5, %v57
    %v59 = vmul.f32 %v54, %v58
    %vm60 = vweird.f32 %v53
    %vm61 = vweird.f32 %v54
    %vm62 = vmor %vm60, %vm61
    %v63 = vsel %vm62, %v54, %v59
    %65 = vset.pattern.permute.xlu0 0
    %66 = vperm.xlu0 %65, %v28
    %v67 = vpop.permute.xlu0 %66
    %v69 = vperm.slane %v30, 0
    %v70 = vmul.f32 %v67, %v69
    %71 = vset.pattern.permute.xlu0 1
    %72 = vperm.xlu0 %71, %v28
    %v73 = vpop.permute.xlu0 %72
    %v75 = vperm.slane %v31, 0
    %v76 = vmul.f32 %v73, %v75
    %v77 = vadd.f32 %v70, %v76
    %79 = vset.pattern.permute.xlu0 0
    %80 = vperm.xlu0 %79, %v63
    %v81 = vpop.permute.xlu0 %80
    %v83 = vmul.f32 %v77, %v81
    %v84 = vperm.slane %v32, 0
    %v85 = vmul.f32 %v46, %v84
    %vm86 = vcmask 80896
    %v87 = vsel %vm86, %v85, 0.0
    %88 = vadd.xlane.f32.xlu0 %v87
    %v89 = vpop.xlane.xlu0 %88
    %v90 = vperm.slane %v33, 0
    %v91 = vmul.f32 %v46, %v90
    %v92 = vsel %vm86, %v91, 0.0
    %93 = vadd.xlane.f32.xlu0 %v92
    %v94 = vpop.xlane.xlu0 %93
    %v95 = vsub.f32 %v28, %v89
    %v96 = vsub.f32 %v28, %v94
    %v97 = vmul.f32 %v95, %v95
    %v98 = vmul.f32 %v96, %v96
    %100 = vrot.lane.b32.xlu0 %v98, 127
    %v101 = vpop.permute.xlu0 %100
    %v103 = vadd.f32 %v97, %v101
    %v104 = vmax.f32 %v103, 1e-24
    %v105 = vrsqrt.pop %v104
    %v106 = vmul.f32 %v105, %v104
    %v107 = vmul.f32 %v106, %v105
    %v108 = vmul.f32 0.5, %v107
    %v109 = vsub.f32 1.5, %v108
    %v110 = vmul.f32 %v105, %v109
    %vm111 = vweird.f32 %v104
    %vm112 = vweird.f32 %v105
    %vm113 = vmor %vm111, %vm112
    %v114 = vsel %vm113, %v105, %v110
    %v115 = vmul.f32 %v95, %v114
    %117 = vset.pattern.permute.xlu0 0
    %118 = vperm.xlu0 %117, %v115
    %v119 = vpop.permute.xlu0 %118
    %v121 = vperm.slane %v34, 0
    %v122 = vmul.f32 %v119, %v121
    %124 = vrot.lane.b32.xlu0 %v114, 1
    %v125 = vpop.permute.xlu0 %124
    %v127 = vmul.f32 %v96, %v125
    %129 = vset.pattern.permute.xlu0 1
    %130 = vperm.xlu0 %129, %v127
    %v131 = vpop.permute.xlu0 %130
    %v133 = vperm.slane %v35, 0
    %v134 = vmul.f32 %v131, %v133
    %v135 = vadd.f32 %v122, %v134
    %v136 = vperm.slane %v36, 0
    %v137 = vsub.f32 %v67, %v136
    %v138 = vmul.f32 %v137, %v137
    %v139 = vperm.slane %v37, 0
    %v140 = vsub.f32 %v73, %v139
    %v141 = vmul.f32 %v140, %v140
    %v142 = vadd.f32 %v138, %v141
    %v143 = vperm.slane %v38, 0
    %v144 = vmul.f32 %v46, %v143
    %v145 = vsel %vm86, %v144, 0.0
    %146 = vadd.xlane.f32.xlu0 %v145
    %v147 = vpop.xlane.xlu0 %146
    %v148 = vrsqrt.pop %v52
    %v149 = vmul.f32 %v148, %v52
    %v150 = vmul.f32 %v149, %v148
    %v151 = vmul.f32 0.5, %v150
    %v152 = vsub.f32 1.5, %v151
    %v153 = vmul.f32 %v148, %v152
    %v154 = vmul.f32 %v52, %v153
    %vm155 = vcmp.eq.f32.partialorder %v52, inf
    %v156 = vsel %vm155, %v52, %v154
    %vm157 = vcmp.eq.f32.partialorder %v52, 0.0
    %v158 = vand.u32 %v52, 2147483648
    %v159 = vsel %vm157, %v158, %v156
    %v160 = vsub.f32 %v147, %v159
    %v161 = vmul.f32 %v160, %v160
    %162 = vst.msk [vmem:[#allocation5] sm:$0xff] %vm86, %v83
    %164 = vrot.lane.b32.xlu0 %v135, 10
    %v165 = vpop.permute.xlu0 %164
    %vm167 = vcmask 162896
    %168 = vst.msk [vmem:[#allocation5] sm:$0xff] %vm167, %v165
    %170 = vrot.lane.b32.xlu0 %v142, 20
    %v171 = vpop.permute.xlu0 %170
    %vm173 = vcmask 244896
    %174 = vst.msk [vmem:[#allocation5] sm:$0xff] %vm173, %v171
    %176 = vrot.lane.b32.xlu0 %v161, 30
    %v177 = vpop.permute.xlu0 %176
    %vm179 = vcmask 253168
    %180 = vst.msk [vmem:[#allocation5] sm:$0xff] %vm179, %v177
    // Predicated region
    $region14: #{tpu_custom_call.1} parent=1 // pred_check
      _
    $region15: #{tpu_custom_call.1} parent=1 // pred_check_branch
      %182 = sbr.rel (0) target = $region17
    $region16: #{tpu_custom_call.1} parent=1 // pred_region
      %184 = vsyncadd [#allocation4], 0
      %s186 = sshll.u32 [#allocation5], 4
      %s187 = int_to_ptr.vmem [resolvable:$true] %s186
      %s188 = sshll.u32 %s2, 4
      %s189 = int_to_ptr.hbm [resolvable:$true] %s188
      %191 = dma.vmem_to_hbm [thread:$0]  %s187, 128, %s189, [#allocation4]
    $region17: #{tpu_custom_call.1} parent=1 // pred_fallthru
      _
    // Predicated region
    $region18: #{tpu_custom_call.1} parent=1 // pred_check
      _
    $region19: #{tpu_custom_call.1} parent=1 // pred_check_branch
      %193 = sbr.rel (0) target = $region21
    $region20: #{tpu_custom_call.1} parent=1 // pred_region
      %195 = dma.done [#allocation4], 128
    $region21: #{tpu_custom_call.1} parent=1 // pred_fallthru
      _
    %196 = vsyncpa [#allocation3], 1
    %197 = vsyncpa [#allocation4], 1

</llo_original>
